<compile_context>
chip_gen: v7x
topology: tpu7x:2x2x1
jax: 0.10.0
libtpu: 0.0.40
codegen_flags: <defaults>
</compile_context>

<pallas_src>
import functools

import numpy as np
import jax
import jax.numpy as jnp
from jax import lax
from jax.experimental import pallas as pl
from jax.experimental.pallas import tpu as pltpu


def _round_up(x, m):
    return -(-int(x) // int(m)) * int(m)


def _densify_kernel(mask_ref, idx_ref, val_ref, out_ref, acc_ref, *,
                    compute_dtype, precision):
    """One grid step: acc(i, j) += A(i, k) @ B_t(j, k)^T  (one-hot matmul).

    mask_ref : (num_row_tiles*num_f_tiles,) int32 SMEM — nnz count per (i, j)
               tile pair (scalar prefetch); gates the whole compute path.
    idx_ref  : (1, 2, tk) int32  [tile-local row, global col], padding = -1
    val_ref  : (1, 1, tk) f32    COO values, padding = 0
    out_ref  : (tn, tf)   f32    output tile (written at k == last)
    acc_ref  : (tn, tf)   f32    accumulator scratch (persists across k)
    """
    i = pl.program_id(0)
    j = pl.program_id(1)
    k = pl.program_id(2)
    num_f_tiles = pl.num_programs(1)
    num_k = pl.num_programs(2)
    tn, tf = out_ref.shape
    tk = idx_ref.shape[-1]

    has = mask_ref[i * num_f_tiles + j] > 0
    is_first = k == 0
    is_last = k == num_k - 1

    # ---- empty tile: just store zeros, no acc traffic, no MXU --------------
    @pl.when(jnp.logical_and(jnp.logical_not(has), is_last))
    def _():
        out_ref[...] = jnp.zeros_like(out_ref)

    # ---- non-empty tile: init accumulator at the first nnz chunk -----------
    @pl.when(jnp.logical_and(has, is_first))
    def _():
        acc_ref[...] = jnp.zeros_like(acc_ref)

    # ---- non-empty tile: one-hot matmul on the MXU --------------------------
    @pl.when(has)
    def _():
        # LHS one-hot: A[n, e] = values[e] * [row_local[e] == n].
        # Rows are pre-localised on the host (row - i*tn), so the compare is
        # against a plain sublane iota.
        rows = idx_ref[0, 0, :]
        vals = val_ref[0, 0, :]
        row_iota = lax.broadcasted_iota(jnp.int32, (tn, tk), 0)
        a = jnp.where(rows[None, :] == row_iota, vals[None, :], 0.0)
        a = a.astype(compute_dtype)

        # RHS one-hot, built transposed: B_t[f, e] = [col[e] - j*tf == f].
        # cols live on lanes; comparing against a sublane iota needs only a
        # sublane broadcast (pure VPU), no lane->sublane relayout.
        cols = idx_ref[0, 1, :] - j * tf
        col_iota = lax.broadcasted_iota(jnp.int32, (tf, tk), 0)
        b_t = (cols[None, :] == col_iota).astype(compute_dtype)

        acc_ref[...] += lax.dot_general(
            a, b_t,
            dimension_numbers=(((1,), (1,)), ((), ())),
            preferred_element_type=jnp.float32,
            precision=precision)

    @pl.when(jnp.logical_and(has, is_last))
    def _():
        out_ref[...] = acc_ref[...].astype(out_ref.dtype)


def coo_to_dense(indices, values, shape, *, tile_n=256, tile_f=512, tile_k=512):
    """Pallas equivalent of torch.sparse_coo_tensor(indices, values, shape).to_dense().

    Duplicate (row, col) entries are summed.  Host-side prep (setup-time glue,
    not the hot path) buckets the COO entries by row tile with tile-local row
    ids and builds a per-(row-tile, feature-tile) nonzero-count mask; the
    kernel densifies via a block-sparsity-gated one-hot matmul on the MXU.
    """
    n, f = int(shape[0]), int(shape[1])
    indices = np.asarray(indices, dtype=np.int64).reshape(2, -1)
    values = np.asarray(values, dtype=np.float32).reshape(-1)
    nnz = int(values.shape[0])

    # ---- tile geometry ------------------------------------------------------
    n_pad = max(8, _round_up(n, 8))
    f_pad = max(128, _round_up(f, 128))
    tn = min(int(tile_n), n_pad)
    tf = min(int(tile_f), f_pad)
    n_pad = _round_up(n_pad, tn)
    f_pad = _round_up(f_pad, tf)
    num_row_tiles = n_pad // tn
    num_f_tiles = f_pad // tf

    # ---- bucket COO entries by row tile (host-side setup) -------------------
    rows = indices[0]
    cols = indices[1]
    tile_of = rows // tn
    counts = np.bincount(tile_of.astype(np.int64), minlength=num_row_tiles)
    max_cnt = int(counts.max()) if counts.size else 0

    tile_k = max(128, _round_up(tile_k, 128))
    tk = min(tile_k, max(256, _round_up(max_cnt, 256)))
    bucket_pad = max(tk, _round_up(max_cnt, tk))
    num_k = bucket_pad // tk

    idx_b = np.full((num_row_tiles, 2, bucket_pad), -1, dtype=np.int32)
    val_b = np.zeros((num_row_tiles, 1, bucket_pad), dtype=np.float32)
    if nnz:
        order = np.argsort(tile_of, kind="stable")
        s_rows = (rows - tile_of * tn)[order]          # tile-local row ids
        s_cols = cols[order]
        s_vals = values[order]
        offs = np.concatenate([[0], np.cumsum(counts)])
        for t in range(num_row_tiles):
            lo, hi = int(offs[t]), int(offs[t + 1])
            c = hi - lo
            if c:
                idx_b[t, 0, :c] = s_rows[lo:hi]
                idx_b[t, 1, :c] = s_cols[lo:hi]
                val_b[t, 0, :c] = s_vals[lo:hi]

    # ---- per-(row tile, feature tile) nnz counts → SMEM gating mask ---------
    # Flattened 1D to avoid 2D SMEM padding blowup.
    if nnz:
        flat = (tile_of * num_f_tiles + cols // tf).astype(np.int64)
        tile_nnz = np.bincount(flat, minlength=num_row_tiles * num_f_tiles)
    else:
        tile_nnz = np.zeros(num_row_tiles * num_f_tiles, dtype=np.int64)
    mask = np.minimum(tile_nnz, np.iinfo(np.int32).max).astype(np.int32)

    # ---- compute dtype: bf16 one-hots when exact (this module's values are
    #      all 1.0); otherwise keep f32 operands with HIGHEST MXU precision.
    bf16_exact = bool(
        np.all(values.astype(jnp.bfloat16).astype(np.float32) == values))
    if bf16_exact:
        compute_dtype = jnp.bfloat16
        precision = None
    else:
        compute_dtype = jnp.float32
        precision = lax.Precision.HIGHEST

    # ---- explicit VMEM budget (v7x has 64 MiB phys / 32 MiB scoped default) -
    itemsize = 2 if compute_dtype == jnp.bfloat16 else 4
    needed = (
        2 * (2 * tk * 4)                    # double-buffered idx blocks
        + 2 * (1 * tk * 4)                  # double-buffered val blocks
        + 2 * (tn * tf * 4)                 # double-buffered output blocks
        + tn * tf * 4                       # f32 accumulator scratch
        + (tn + tf) * tk * (itemsize + 4)   # in-flight one-hot intermediates
    )
    vmem_limit = int(min(64 << 20, max(2 * needed + (4 << 20), 32 << 20)))

    kernel = functools.partial(
        _densify_kernel, compute_dtype=compute_dtype, precision=precision)

    out_padded = pl.pallas_call(
        kernel,
        out_shape=jax.ShapeDtypeStruct((n_pad, f_pad), jnp.float32),
        grid_spec=pltpu.PrefetchScalarGridSpec(
            num_scalar_prefetch=1,
            # Row/feature tiles lead (megacore-parallel), nnz chunks innermost
            # (reduction into the VMEM accumulator).
            grid=(num_row_tiles, num_f_tiles, num_k),
            in_specs=[
                pl.BlockSpec((1, 2, tk), lambda i, j, k, m: (i, 0, k)),
                pl.BlockSpec((1, 1, tk), lambda i, j, k, m: (i, 0, k)),
            ],
            out_specs=pl.BlockSpec((tn, tf), lambda i, j, k, m: (i, j)),
            scratch_shapes=[
                pltpu.VMEM((tn, tf), jnp.float32),
            ],
        ),
        compiler_params=pltpu.CompilerParams(
            dimension_semantics=("parallel", "parallel", "arbitrary"),
            vmem_limit_bytes=vmem_limit,
        ),
    )(jnp.asarray(mask), jnp.asarray(idx_b), jnp.asarray(val_b))

    if (n_pad, f_pad) != (n, f):
        out_padded = out_padded[:n, :f]
    return out_padded


# -----------------------------------------------------------------------------
# Plain-Python (setup-time) construction of the COO triplets, mirroring the
# __init__ logic of the PyTorch module.  This is glue, not the hot path.
# -----------------------------------------------------------------------------
def _diag_features(num_nodes):
    nodes = np.arange(num_nodes)
    indices = np.stack([nodes, nodes], axis=0)
    values = np.ones(num_nodes, dtype=np.float32)
    shape = (num_nodes, num_nodes)
    return indices, values, shape


def _degree_features(edge_index, num_nodes):
    # SparseTensor(row=e[0], col=e[1]).sum(dim=0): per-column sum = in-degree.
    degree = np.zeros(num_nodes, dtype=np.int64)
    np.add.at(degree, np.asarray(edge_index[1]), 1)
    degree_list = np.unique(degree)
    degree_map = np.zeros_like(degree)
    degree_map[degree_list] = np.arange(len(degree_list))
    col = degree_map[degree]
    indices = np.stack([np.arange(num_nodes), col], axis=0)
    values = np.ones(num_nodes, dtype=np.float32)
    shape = (num_nodes, int(col.max()) + 1)
    return indices, values, shape


def _diag_degree_features(edge_index, num_nodes):
    i1, v1, s1 = _diag_features(num_nodes)
    i2, v2, s2 = _degree_features(edge_index, num_nodes)
    # NOTE: matches the PyTorch code exactly (degree columns are NOT offset,
    # so duplicates may overlap the diagonal block and are summed).
    indices = np.concatenate([i1, i2], axis=1)
    values = np.concatenate([v1, v2])
    shape = (s1[0], s1[1] + s2[1])
    return indices, values, shape


class FeaturesPallas:
    """JAX/Pallas port of `Features` (eval mode: dropout inactive)."""

    def __init__(self, edge_index, num_nodes, version):
        self.version = version
        self.num_nodes = num_nodes
        if version == "diag":
            indices, values, shape = _diag_features(num_nodes)
        elif version == "degree":
            indices, values, shape = _degree_features(edge_index, num_nodes)
        elif version == "diag-degree":
            indices, values, shape = _diag_degree_features(edge_index, num_nodes)
        else:
            # TODO(synk): 'fp' (APA feature propagation) and 'obs-diag' need
            # components not provided in the module source; not implemented.
            raise ValueError(version)
        self.indices = indices
        self.values = values
        self.shape = shape

    def forward(self):
        return coo_to_dense(self.indices, self.values, self.shape)


def _reference_dense(indices, values, shape):
    ref = np.zeros(shape, dtype=np.float32)
    np.add.at(ref, (np.asarray(indices[0]), np.asarray(indices[1])),
              np.asarray(values, dtype=np.float32))
    return ref


if __name__ == "__main__":
    key = jax.random.PRNGKey(0)

    # Small graph (module-scale unit test).
    num_nodes = 16
    num_edges = 24
    k1, k2 = jax.random.split(key)
    src = np.asarray(jax.random.randint(k1, (num_edges,), 0, num_nodes))
    dst = np.asarray(jax.random.randint(k2, (num_edges,), 0, num_nodes))
    edge_index = np.stack([src, dst], axis=0)

    for version in ("diag", "degree", "diag-degree"):
        feats = FeaturesPallas(edge_index, num_nodes, version)
        dense = jax.block_until_ready(feats.forward())
        ref = _reference_dense(feats.indices, feats.values, feats.shape)
        assert dense.shape == feats.shape, version
        assert np.array_equal(np.asarray(dense), ref), f"mismatch for {version}"

    # Medium graph: exercises multiple row/feature tiles, block-sparsity
    # gating (some (i, j) tiles are empty), the K-reduction accumulator
    # (tile_k=128 -> num_k=2) and the zero-tile fast path.
    num_nodes2 = 300
    num_edges2 = 900
    k3, k4 = jax.random.split(k2)
    src2 = np.asarray(jax.random.randint(k3, (num_edges2,), 0, num_nodes2))
    dst2 = np.asarray(jax.random.randint(k4, (num_edges2,), 0, num_nodes2))
    edge_index2 = np.stack([src2, dst2], axis=0)
    feats2 = FeaturesPallas(edge_index2, num_nodes2, "diag-degree")
    dense2 = jax.block_until_ready(
        coo_to_dense(feats2.indices, feats2.values, feats2.shape,
                     tile_n=128, tile_f=256, tile_k=128))
    ref2 = _reference_dense(feats2.indices, feats2.values, feats2.shape)
    assert dense2.shape == feats2.shape
    assert np.array_equal(np.asarray(dense2), ref2), "mismatch for medium graph"

    print("KERNEL_OK")
</pallas_src>

<mosaic_0001>
module attributes {stable_mosaic.version = 11 : i64} {
  func.func @_densify_kernel(%arg0: i32, %arg1: i32, %arg2: i32, %arg3: memref<1xi32, #tpu.memory_space<smem>>, %arg4: memref<1x2x256xi32, #tpu.memory_space<vmem>>, %arg5: memref<1x1x256xf32, #tpu.memory_space<vmem>>, %arg6: memref<16x128xf32, #tpu.memory_space<vmem>>, %arg7: memref<16x128xf32, #tpu.memory_space<vmem>>) attributes {dimension_semantics = [#tpu.dimension_semantics<parallel>, #tpu.dimension_semantics<parallel>, #tpu.dimension_semantics<arbitrary>], iteration_bounds = array<i64: 1, 1, 1>, scalar_prefetch = 1 : i64, scratch_operands = 1 : i64, tpu.core_type = #tpu.core_type<tc>, window_params = [{transform_indices = @transform_0, window_bounds = array<i64: 1, 2, 256>}, {transform_indices = @transform_1, window_bounds = array<i64: 1, 1, 256>}, {transform_indices = @transform_2, window_bounds = array<i64: 16, 128>}]} {
    %c1_i32 = arith.constant 1 : i32
    %0 = arith.muli %arg0, %c1_i32 : i32
    %1 = arith.addi %0, %arg1 : i32
    %2 = arith.index_cast %1 : i32 to index
    %3 = memref.load %arg3[%2] : memref<1xi32, #tpu.memory_space<smem>>
    %c0_i32 = arith.constant 0 : i32
    %4 = arith.cmpi sgt, %3, %c0_i32 : i32
    %c0_i32_0 = arith.constant 0 : i32
    %5 = arith.cmpi eq, %arg2, %c0_i32_0 : i32
    %c0_i32_1 = arith.constant 0 : i32
    %6 = arith.cmpi eq, %arg2, %c0_i32_1 : i32
    %true = arith.constant true
    %7 = arith.xori %4, %true : i1
    %8 = arith.andi %7, %6 : i1
    %9 = arith.extui %8 : i1 to i32
    %c0_i32_2 = arith.constant 0 : i32
    %10 = arith.cmpi ne, %9, %c0_i32_2 : i32
    scf.if %10 {
      %cst = arith.constant 0.000000e+00 : f32
      %19 = vector.broadcast %cst : f32 to vector<16x128xf32>
      %c0 = arith.constant 0 : index
      %c0_6 = arith.constant 0 : index
      %20 = vector.load %arg6[%c0, %c0_6] : memref<16x128xf32, #tpu.memory_space<vmem>>, vector<16x128xf32>
      tpu.vector_store %arg6[%c0, %c0_6], %19 {strides = array<i32>} : memref<16x128xf32, #tpu.memory_space<vmem>>, vector<16x128xf32>,
    } else {
    }
    %11 = arith.andi %4, %5 : i1
    %12 = arith.extui %11 : i1 to i32
    %c0_i32_3 = arith.constant 0 : i32
    %13 = arith.cmpi ne, %12, %c0_i32_3 : i32
    scf.if %13 {
      %cst = arith.constant 0.000000e+00 : f32
      %19 = vector.broadcast %cst : f32 to vector<16x128xf32>
      %c0 = arith.constant 0 : index
      %c0_6 = arith.constant 0 : index
      %20 = vector.load %arg7[%c0, %c0_6] : memref<16x128xf32, #tpu.memory_space<vmem>>, vector<16x128xf32>
      tpu.vector_store %arg7[%c0, %c0_6], %19 {strides = array<i32>} : memref<16x128xf32, #tpu.memory_space<vmem>>, vector<16x128xf32>,
    } else {
    }
    %14 = arith.extui %4 : i1 to i32
    %c0_i32_4 = arith.constant 0 : i32
    %15 = arith.cmpi ne, %14, %c0_i32_4 : i32
    scf.if %15 {
      %c0 = arith.constant 0 : index
      %c0_6 = arith.constant 0 : index
      %c0_7 = arith.constant 0 : index
      %19 = vector.load %arg4[%c0, %c0_6, %c0_7] : memref<1x2x256xi32, #tpu.memory_space<vmem>>, vector<1x1x256xi32>
      %20 = vector.shape_cast %19 : vector<1x1x256xi32> to vector<256xi32>
      %c0_8 = arith.constant 0 : index
      %c0_9 = arith.constant 0 : index
      %c0_10 = arith.constant 0 : index
      %21 = vector.load %arg5[%c0_8, %c0_9, %c0_10] : memref<1x1x256xf32, #tpu.memory_space<vmem>>, vector<1x1x256xf32>
      %22 = vector.shape_cast %21 : vector<1x1x256xf32> to vector<256xf32>
      %23 = tpu.iota {dimensions = array<i32: 0>} : vector<16x256xi32>
      %24 = vector.shape_cast %20 : vector<256xi32> to vector<1x256xi32>
      %25 = vector.broadcast %24 : vector<1x256xi32> to vector<16x256xi32>
      %26 = arith.cmpi eq, %25, %23 : vector<16x256xi32>
      %27 = vector.shape_cast %22 : vector<256xf32> to vector<1x256xf32>
      %cst = arith.constant 0.000000e+00 : f32
      %28 = vector.shape_cast %27 : vector<1x256xf32> to vector<1x256xf32>
      %29 = vector.broadcast %28 : vector<1x256xf32> to vector<16x256xf32>
      %30 = vector.broadcast %cst : f32 to vector<16x256xf32>
      %31 = arith.select %26, %29, %30 : vector<16x256xi1>, vector<16x256xf32>
      %32 = arith.truncf %31 : vector<16x256xf32> to vector<16x256xbf16>
      %c0_11 = arith.constant 0 : index
      %c1 = arith.constant 1 : index
      %c0_12 = arith.constant 0 : index
      %33 = vector.load %arg4[%c0_11, %c1, %c0_12] : memref<1x2x256xi32, #tpu.memory_space<vmem>>, vector<1x1x256xi32>
      %34 = vector.shape_cast %33 : vector<1x1x256xi32> to vector<256xi32>
      %c128_i32 = arith.constant 128 : i32
      %35 = arith.muli %arg1, %c128_i32 : i32
      %36 = vector.broadcast %35 : i32 to vector<256xi32>
      %37 = arith.subi %34, %36 : vector<256xi32>
      %38 = tpu.iota {dimensions = array<i32: 0>} : vector<128x256xi32>
      %39 = vector.shape_cast %37 : vector<256xi32> to vector<1x256xi32>
      %40 = vector.broadcast %39 : vector<1x256xi32> to vector<128x256xi32>
      %41 = arith.cmpi eq, %40, %38 : vector<128x256xi32>
      %42 = arith.extui %41 : vector<128x256xi1> to vector<128x256xi32>
      %43 = arith.sitofp %42 : vector<128x256xi32> to vector<128x256xf32>
      %44 = arith.truncf %43 : vector<128x256xf32> to vector<128x256xbf16>
      %c0_13 = arith.constant 0 : index
      %c0_14 = arith.constant 0 : index
      %45 = vector.load %arg7[%c0_13, %c0_14] : memref<16x128xf32, #tpu.memory_space<vmem>>, vector<16x128xf32>
      %cst_15 = arith.constant dense<0.000000e+00> : vector<16x128xf32>
      %46 = tpu.matmul %32, %44, %cst_15 {dimension_numbers = #tpu.dot_dimension_numbers<[1], [1], [0], [0], [0, 0, 1, 0], [], []>} : vector<16x256xbf16>, vector<128x256xbf16>, vector<16x128xf32> -> vector<16x128xf32>
      %47 = arith.addf %45, %46 : vector<16x128xf32>
      %c0_16 = arith.constant 0 : index
      %c0_17 = arith.constant 0 : index
      %48 = vector.load %arg7[%c0_16, %c0_17] : memref<16x128xf32, #tpu.memory_space<vmem>>, vector<16x128xf32>
      tpu.vector_store %arg7[%c0_16, %c0_17], %47 {strides = array<i32>} : memref<16x128xf32, #tpu.memory_space<vmem>>, vector<16x128xf32>,
    } else {
    }
    %16 = arith.andi %4, %6 : i1
    %17 = arith.extui %16 : i1 to i32
    %c0_i32_5 = arith.constant 0 : i32
    %18 = arith.cmpi ne, %17, %c0_i32_5 : i32
    scf.if %18 {
      %c0 = arith.constant 0 : index
      %c0_6 = arith.constant 0 : index
      %19 = vector.load %arg7[%c0, %c0_6] : memref<16x128xf32, #tpu.memory_space<vmem>>, vector<16x128xf32>
      %c0_7 = arith.constant 0 : index
      %c0_8 = arith.constant 0 : index
      %20 = vector.load %arg6[%c0_7, %c0_8] : memref<16x128xf32, #tpu.memory_space<vmem>>, vector<16x128xf32>
      tpu.vector_store %arg6[%c0_7, %c0_8], %19 {strides = array<i32>} : memref<16x128xf32, #tpu.memory_space<vmem>>, vector<16x128xf32>,
    } else {
    }
    return
  }
  func.func @transform_0(%arg0: i32, %arg1: i32, %arg2: i32, %arg3: memref<1xi32, #tpu.memory_space<smem>>) -> (i32, i32, i32) {
    %c0_i32 = arith.constant 0 : i32
    %c0_i32_0 = arith.constant 0 : i32
    return %arg0, %c0_i32, %arg2 : i32, i32, i32
  }
  func.func @transform_1(%arg0: i32, %arg1: i32, %arg2: i32, %arg3: memref<1xi32, #tpu.memory_space<smem>>) -> (i32, i32, i32) {
    %c0_i32 = arith.constant 0 : i32
    %c0_i32_0 = arith.constant 0 : i32
    return %arg0, %c0_i32, %arg2 : i32, i32, i32
  }
  func.func @transform_2(%arg0: i32, %arg1: i32, %arg2: i32, %arg3: memref<1xi32, #tpu.memory_space<smem>>) -> (i32, i32) {
    %c0_i32 = arith.constant 0 : i32
    return %arg0, %arg1 : i32, i32
  }
}

</mosaic_0001>

<llo_original>
// kernel: tpu_custom_call.1
$region0: #{tpu_custom_call.1}
  #allocation0 [shape = 'u32[]', space=smem, size = 0x4, offset = 0x4, fixed_abs, tag = 'smem constant byte address 0x4 - core index']
  #allocation1 [shape = 'u32[144,128]{1,0:T(1,128)}', space=vmem, size = 0x12000, scoped, tag = 'internal scratch']
  #allocation2 [shape = 'f32[16,128]{1,0:T(8,128)}', space=vmem, size = 0x2000, scoped, tag = 'scratch operand']
  #allocation3 [shape = 's32[1]{0}', space=sflag, size = 0x4, scoped, tag = 'scoped memory for tpu_custom_call.1']
  #allocation4 [shape = 's32[1]{0:T(128)S(6)}', space=smem, size = 0x200, scoped, tag = 'prefetched SMEM operand 0']
  %s0 = inlined_call_operand.<no memory space> [shape: s32[1], index: 0, kind: input, shape index: {}]
  %s1 = inlined_call_operand.hbm [shape: s32[1,2,256], index: 1, kind: input, shape index: {}]
  %s2 = inlined_call_operand.vmem [shape: f32[1,1,256], index: 2, kind: input, shape index: {}]
  %s3 = inlined_call_operand.hbm [shape: f32[16,128], index: 3, kind: output, shape index: {}]
  %s4 = sld [smem:[#allocation0]]
  $region38: #{tpu_custom_call.1} parent=0
    _
  %s6 = ssub.s32 1, %s4
  %s7 = scalar_select 0, %s6, %s4
  %8 = sst [smem:[#allocation4]] %s0
  $region1: #{tpu_custom_call.1} parent=0
    #allocation5 [shape = 'u8[2048]{0}', space=vmem, size = 0x800, scoped, tag = 'input window, operand 1, single buffered']
    #allocation6 [shape = 's32[1]{0}', space=sflag, size = 0x4, scoped, tag = 'scoped memory for tpu_custom_call.1']
    #allocation7 [shape = 's32[1]{0}', space=sflag, size = 0x4, scoped, tag = 'scoped memory for tpu_custom_call.1']
    #allocation8 [shape = 'u8[8192]{0}', space=vmem, size = 0x2000, scoped, tag = 'output window, operand 0, single buffered']
    %9 = vsyncpa [#allocation6], 0
    %10 = vsyncpa [#allocation7], 0
    // Predicated region
    $region2: #{tpu_custom_call.1} parent=1 // pred_check
      _
    $region3: #{tpu_custom_call.1} parent=1 // pred_check_branch
      %12 = sbr.rel (0) target = $region5
    $region4: #{tpu_custom_call.1} parent=1 // pred_region
      %s14 = ssub.s32 64, 64
      %15 = vsyncadd [#allocation6], %s14
      %s17 = sshll.u32 [#allocation5], 4
      %s18 = int_to_ptr.vmem [resolvable:$true] %s17
      %20 = dma.hbm_to_vmem [thread:$0]  %s1, 64, %s18, [#allocation6]
    $region5: #{tpu_custom_call.1} parent=1 // pred_fallthru
      _
    // Predicated region
    $region6: #{tpu_custom_call.1} parent=1 // pred_check
      _
    $region7: #{tpu_custom_call.1} parent=1 // pred_check_branch
      %22 = sbr.rel (0) target = $region9
    $region8: #{tpu_custom_call.1} parent=1 // pred_region
      _
    $region9: #{tpu_custom_call.1} parent=1 // pred_fallthru
      _
    // Predicated region
    $region10: #{tpu_custom_call.1} parent=1 // pred_check
      _
    $region11: #{tpu_custom_call.1} parent=1 // pred_check_branch
      %24 = sbr.rel (0) target = $region13
    $region12: #{tpu_custom_call.1} parent=1 // pred_region
      %25 = dma.done [#allocation6], 64
    $region13: #{tpu_custom_call.1} parent=1 // pred_fallthru
      _
    %s27 = sadd.s32 0, 0
    %s28 = sld [smem:[#allocation4 + %s27]]
    %p29 = scmp.gt.s32.totalorder %s28, 0
    %p30 = scmp.eq.s32.totalorder 0, 0
    %p31 = scmp.le.s32.totalorder %s28, 0
    %p32 = pnand %p31, %p30
    %p33 = pneg %p32
    // Predicated region
    $region14: #{tpu_custom_call.1} parent=1 // pred_check
      _
    $region15: #{tpu_custom_call.1} parent=1 // pred_check_branch
      %35 = sbr.rel (%p32) target = $region17
    $region16: #{tpu_custom_call.1} parent=1 // pred_region
      %36 = vst [vmem:[#allocation8] sm:$0xff] 0.0
      %37 = vst [vmem:[#allocation8 + $0x8] sm:$0xff] 0.0
    $region17: #{tpu_custom_call.1} parent=1 // pred_fallthru
      _
    %p38 = pnand %p29, %p30
    %p39 = pneg %p38
    // Predicated region
    $region18: #{tpu_custom_call.1} parent=1 // pred_check
      _
    $region19: #{tpu_custom_call.1} parent=1 // pred_check_branch
      %41 = sbr.rel (%p38) target = $region21
    $region20: #{tpu_custom_call.1} parent=1 // pred_region
      %42 = vst [vmem:[#allocation2] sm:$0xff] 0.0
      %43 = vst [vmem:[#allocation2 + $0x8] sm:$0xff] 0.0
    $region21: #{tpu_custom_call.1} parent=1 // pred_fallthru
      _
    // Predicated region
    $region22: #{tpu_custom_call.1} parent=1 // pred_check
      %p44 = pneg %p29
    $region23: #{tpu_custom_call.1} parent=1 // pred_check_branch
      %46 = sbr.rel (%p44) target = $region25
    $region24: #{tpu_custom_call.1} parent=1 // pred_region
      %v47 = vld [vmem:[#allocation5] ss:$2 sm:$0x3]
      %v48 = vld [vmem:[%s2] sm:$0x3]
      %v49 = vlaneseq
      %v50 = vshrl.u32 %v49, 7
      %v51 = vadd.s32 %v50, 8
      %v52 = vlaneseq
      %v53 = vshrl.u32 %v52, 7
      %v54 = vsub.s32 0, %v53
      %v55 = vrot.slane %v47, %v54
      %v56 = vlaneseq
      %v57 = vshrl.u32 %v56, 7
      %v58 = vsub.s32 1, %v57
      %v59 = vrot.slane %v47, %v58
      %vm60 = vcmp.eq.s32.totalorder %v55, %v50
      %vm61 = vcmp.eq.s32.totalorder %v59, %v50
      %vm62 = vcmp.eq.s32.totalorder %v55, %v51
      %vm63 = vcmp.eq.s32.totalorder %v59, %v51
      %v65 = vlaneseq
      %v66 = vshrl.u32 %v65, 7
      %v67 = vsub.s32 0, %v66
      %v68 = vrot.slane %v48, %v67
      %v69 = vlaneseq
      %v70 = vshrl.u32 %v69, 7
      %v71 = vsub.s32 1, %v70
      %v72 = vrot.slane %v48, %v71
      %v75 = vsel %vm60, %v68, 0.0
      %v76 = vsel %vm61, %v72, 0.0
      %v77 = vsel %vm62, %v68, 0.0
      %v78 = vsel %vm63, %v72, 0.0
      %v79 = vpack.c.bf16 %v77, %v75
      %v80 = vpack.c.bf16 %v78, %v76
      %s81 = scalar_lea.vmem [#allocation5], 1
      %v82 = vld [vmem:[%s81] ss:$2 sm:$0x3]
      %s83 = smul.u32 0, 128
      %v84 = vstv %s83
      %v85 = vsub.s32 %v82, %v84
      %v86 = vadd.s32 %v50, 16
      %v87 = vadd.s32 %v50, 24
      %v88 = vadd.s32 %v50, 32
      %v89 = vadd.s32 %v50, 40
      %v90 = vadd.s32 %v50, 48
      %v91 = vadd.s32 %v50, 56
      %v92 = vadd.s32 %v50, 64
      %v93 = vadd.s32 %v50, 72
      %v94 = vadd.s32 %v50, 80
      %v95 = vadd.s32 %v50, 88
      %v96 = vadd.s32 %v50, 96
      %v97 = vadd.s32 %v50, 104
      %v98 = vadd.s32 %v50, 112
      %v99 = vadd.s32 %v50, 120
      %v100 = vlaneseq
      %v101 = vshrl.u32 %v100, 7
      %v102 = vsub.s32 0, %v101
      %v103 = vrot.slane %v85, %v102
      %v104 = vlaneseq
      %v105 = vshrl.u32 %v104, 7
      %v106 = vsub.s32 1, %v105
      %v107 = vrot.slane %v85, %v106
      %vm108 = vcmp.eq.s32.totalorder %v103, %v50
      %vm109 = vcmp.eq.s32.totalorder %v107, %v50
      %vm110 = vcmp.eq.s32.totalorder %v103, %v51
      %vm111 = vcmp.eq.s32.totalorder %v107, %v51
      %vm112 = vcmp.eq.s32.totalorder %v103, %v86
      %vm113 = vcmp.eq.s32.totalorder %v107, %v86
      %vm114 = vcmp.eq.s32.totalorder %v103, %v87
      %vm115 = vcmp.eq.s32.totalorder %v107, %v87
      %vm116 = vcmp.eq.s32.totalorder %v103, %v88
      %vm117 = vcmp.eq.s32.totalorder %v107, %v88
      %vm118 = vcmp.eq.s32.totalorder %v103, %v89
      %vm119 = vcmp.eq.s32.totalorder %v107, %v89
      %vm120 = vcmp.eq.s32.totalorder %v103, %v90
      %vm121 = vcmp.eq.s32.totalorder %v107, %v90
      %vm122 = vcmp.eq.s32.totalorder %v103, %v91
      %vm123 = vcmp.eq.s32.totalorder %v107, %v91
      %vm124 = vcmp.eq.s32.totalorder %v103, %v92
      %vm125 = vcmp.eq.s32.totalorder %v107, %v92
      %vm126 = vcmp.eq.s32.totalorder %v103, %v93
      %vm127 = vcmp.eq.s32.totalorder %v107, %v93
      %vm128 = vcmp.eq.s32.totalorder %v103, %v94
      %vm129 = vcmp.eq.s32.totalorder %v107, %v94
      %vm130 = vcmp.eq.s32.totalorder %v103, %v95
      %vm131 = vcmp.eq.s32.totalorder %v107, %v95
      %vm132 = vcmp.eq.s32.totalorder %v103, %v96
      %vm133 = vcmp.eq.s32.totalorder %v107, %v96
      %vm134 = vcmp.eq.s32.totalorder %v103, %v97
      %vm135 = vcmp.eq.s32.totalorder %v107, %v97
      %vm136 = vcmp.eq.s32.totalorder %v103, %v98
      %vm137 = vcmp.eq.s32.totalorder %v107, %v98
      %vm138 = vcmp.eq.s32.totalorder %v103, %v99
      %vm139 = vcmp.eq.s32.totalorder %v107, %v99
      %v140 = vsel %vm108, 1, 0
      %v141 = vsel %vm109, 1, 0
      %v142 = vsel %vm110, 1, 0
      %v143 = vsel %vm111, 1, 0
      %v144 = vsel %vm112, 1, 0
      %v145 = vsel %vm113, 1, 0
      %v146 = vsel %vm114, 1, 0
      %v147 = vsel %vm115, 1, 0
      %v148 = vsel %vm116, 1, 0
      %v149 = vsel %vm117, 1, 0
      %v150 = vsel %vm118, 1, 0
      %v151 = vsel %vm119, 1, 0
      %v152 = vsel %vm120, 1, 0
      %v153 = vsel %vm121, 1, 0
      %v154 = vsel %vm122, 1, 0
      %v155 = vsel %vm123, 1, 0
      %v156 = vsel %vm124, 1, 0
      %v157 = vsel %vm125, 1, 0
      %v158 = vsel %vm126, 1, 0
      %v159 = vsel %vm127, 1, 0
      %v160 = vsel %vm128, 1, 0
      %v161 = vsel %vm129, 1, 0
      %v162 = vsel %vm130, 1, 0
      %v163 = vsel %vm131, 1, 0
      %v164 = vsel %vm132, 1, 0
      %v165 = vsel %vm133, 1, 0
      %v166 = vsel %vm134, 1, 0
      %v167 = vsel %vm135, 1, 0
      %v168 = vsel %vm136, 1, 0
      %v169 = vsel %vm137, 1, 0
      %v170 = vsel %vm138, 1, 0
      %v171 = vsel %vm139, 1, 0
      %v172 = vcvt.s32.f32 %v140
      %v173 = vcvt.s32.f32 %v141
      %v174 = vcvt.s32.f32 %v142
      %v175 = vcvt.s32.f32 %v143
      %v176 = vcvt.s32.f32 %v144
      %v177 = vcvt.s32.f32 %v145
      %v178 = vcvt.s32.f32 %v146
      %v179 = vcvt.s32.f32 %v147
      %v180 = vcvt.s32.f32 %v148
      %v181 = vcvt.s32.f32 %v149
      %v182 = vcvt.s32.f32 %v150
      %v183 = vcvt.s32.f32 %v151
      %v184 = vcvt.s32.f32 %v152
      %v185 = vcvt.s32.f32 %v153
      %v186 = vcvt.s32.f32 %v154
      %v187 = vcvt.s32.f32 %v155
      %v188 = vcvt.s32.f32 %v156
      %v189 = vcvt.s32.f32 %v157
      %v190 = vcvt.s32.f32 %v158
      %v191 = vcvt.s32.f32 %v159
      %v192 = vcvt.s32.f32 %v160
      %v193 = vcvt.s32.f32 %v161
      %v194 = vcvt.s32.f32 %v162
      %v195 = vcvt.s32.f32 %v163
      %v196 = vcvt.s32.f32 %v164
      %v197 = vcvt.s32.f32 %v165
      %v198 = vcvt.s32.f32 %v166
      %v199 = vcvt.s32.f32 %v167
      %v200 = vcvt.s32.f32 %v168
      %v201 = vcvt.s32.f32 %v169
      %v202 = vcvt.s32.f32 %v170
      %v203 = vcvt.s32.f32 %v171
      %v204 = vpack.c.bf16 %v174, %v172
      %v205 = vpack.c.bf16 %v175, %v173
      %v206 = vpack.c.bf16 %v178, %v176
      %v207 = vpack.c.bf16 %v179, %v177
      %v208 = vpack.c.bf16 %v182, %v180
      %v209 = vpack.c.bf16 %v183, %v181
      %v210 = vpack.c.bf16 %v186, %v184
      %v211 = vpack.c.bf16 %v187, %v185
      %v212 = vpack.c.bf16 %v190, %v188
      %v213 = vpack.c.bf16 %v191, %v189
      %v214 = vpack.c.bf16 %v194, %v192
      %v215 = vpack.c.bf16 %v195, %v193
      %v216 = vpack.c.bf16 %v198, %v196
      %v217 = vpack.c.bf16 %v199, %v197
      %v218 = vpack.c.bf16 %v202, %v200
      %v219 = vpack.c.bf16 %v203, %v201
      %v220 = vld [vmem:[#allocation2] sm:$0xff]
      %v221 = vld [vmem:[#allocation2 + $0x8] sm:$0xff]
      %222 = vmatprep.subr.bf16.mxu0 %v205
      %223 = vmatpush1.bf16.xpose.msra.mxu0 %v204
      %224 = vmatprep.subr.bf16.mxu0 %v207
      %225 = vmatpush1.bf16.xpose.msra.mxu0 %v206
      %226 = vmatprep.subr.bf16.mxu0 %v209
      %227 = vmatpush1.bf16.xpose.msra.mxu0 %v208
      %228 = vmatprep.subr.bf16.mxu0 %v211
      %229 = vmatpush1.bf16.xpose.msra.mxu0 %v210
      %230 = vmatprep.subr.bf16.mxu0 %v213
      %231 = vmatpush1.bf16.xpose.msra.mxu0 %v212
      %232 = vmatprep.subr.bf16.mxu0 %v215
      %233 = vmatpush1.bf16.xpose.msra.mxu0 %v214
      %234 = vmatprep.subr.bf16.mxu0 %v217
      %235 = vmatpush1.bf16.xpose.msra.mxu0 %v216
      %236 = vmatprep.subr.bf16.mxu0 %v219
      %237 = vmatpush1.bf16.xpose.msra.mxu0 %v218
      %238 = vmatprep.subr.bf16.mxu0 0
      %239 = vmatpush1.bf16.xpose.msra.mxu0 0
      %240 = vmatprep.subr.bf16.mxu0 0
      %241 = vmatpush1.bf16.xpose.msra.mxu0 0
      %242 = vmatprep.subr.bf16.mxu0 0
      %243 = vmatpush1.bf16.xpose.msra.mxu0 0
      %244 = vmatprep.subr.bf16.mxu0 0
      %245 = vmatpush1.bf16.xpose.msra.mxu0 0
      %246 = vmatprep.subr.bf16.mxu0 0
      %247 = vmatpush1.bf16.xpose.msra.mxu0 0
      %248 = vmatprep.subr.bf16.mxu0 0
      %249 = vmatpush1.bf16.xpose.msra.mxu0 0
      %250 = vmatprep.subr.bf16.mxu0 0
      %251 = vmatpush1.bf16.xpose.msra.mxu0 0
      %252 = vmatprep.subr.bf16.mxu0 0
      %253 = vmatpush1.bf16.xpose.msra.mxu0 0
      %254 = vmatprep.mubr.bf16.mxu0 %v80
      %255 = vmatmul.mubr.bf16.gmra.mrb[0].mxu0 %v79
      %v256 = vpop.f32.mrb[0].mxu0
      %v257 = vadd.f32 0.0, %v256
      %v258 = vpop.f32.mrb[0].mxu0
      %v259 = vpop.f32.mrb[0].mxu0
      %v260 = vadd.f32 0.0, %v259
      %v261 = vpop.f32.mrb[0].mxu0
      %262 = vdwg.mxu0
      %v263 = vadd.f32 %v220, %v257
      %v264 = vadd.f32 %v221, %v260
      %265 = vst [vmem:[#allocation2] sm:$0xff] %v263
      %266 = vst [vmem:[#allocation2 + $0x8] sm:$0xff] %v264
    $region25: #{tpu_custom_call.1} parent=1 // pred_fallthru
      _
    // Predicated region
    $region26: #{tpu_custom_call.1} parent=1 // pred_check
      _
    $region27: #{tpu_custom_call.1} parent=1 // pred_check_branch
      %268 = sbr.rel (%p38) target = $region29
    $region28: #{tpu_custom_call.1} parent=1 // pred_region
      %v269 = vld [vmem:[#allocation2] sm:$0xff]
      %v270 = vld [vmem:[#allocation2 + $0x8] sm:$0xff]
      %271 = vst [vmem:[#allocation8] sm:$0xff] %v269
      %272 = vst [vmem:[#allocation8 + $0x8] sm:$0xff] %v270
    $region29: #{tpu_custom_call.1} parent=1 // pred_fallthru
      _
    // Predicated region
    $region30: #{tpu_custom_call.1} parent=1 // pred_check
      _
    $region31: #{tpu_custom_call.1} parent=1 // pred_check_branch
      %274 = sbr.rel (0) target = $region33
    $region32: #{tpu_custom_call.1} parent=1 // pred_region
      %s276 = ssub.s32 256, 256
      %277 = vsyncadd [#allocation7], %s276
      %s278 = sshll.u32 [#allocation8], 4
      %s279 = int_to_ptr.vmem [resolvable:$true] %s278
      %284 = dma.vmem_to_hbm [thread:$0]  %s279, 256, %s3, [#allocation7], 128, 128, 8
    $region33: #{tpu_custom_call.1} parent=1 // pred_fallthru
      _
    // Predicated region
    $region34: #{tpu_custom_call.1} parent=1 // pred_check
      _
    $region35: #{tpu_custom_call.1} parent=1 // pred_check_branch
      %286 = sbr.rel (0) target = $region37
    $region36: #{tpu_custom_call.1} parent=1 // pred_region
      %287 = dma.done [#allocation7], 256
    $region37: #{tpu_custom_call.1} parent=1 // pred_fallthru
      _
    %288 = vsyncpa [#allocation6], 1
    %289 = vsyncpa [#allocation7], 1

</llo_original>
